<compile_context>
chip_gen: v5e
topology: v5e:2x2
jax: 0.10.0
libtpu: 0.0.40
codegen_flags: <defaults>
</compile_context>

<pallas_src>
import math

import jax
import jax.numpy as jnp
from jax.experimental import pallas as pl
from jax.experimental.pallas import tpu as pltpu

HIDDEN = 20          # hidden_neurons in ParamNN
H_PAD = 24           # hidden padded to a multiple of the f32 sublane tile (8)
NUM_RES = 3          # num_layers - 1 ResBlocks
OUT_DIM = 3          # (beta, gamma, mu)
MAX_BLOCK_N = 512    # batch (lane) tile cap; multiple of 128, within vreg budget


def paramnn_kernel(t_ref,
                   w0_ref, b0_ref,
                   wres_ref, bres_ref,
                   w4_ref, b4_ref,
                   out_ref):
    t = t_ref[...]                                            # (1, TN)  times on lanes

    # Layer 0: Linear(1, H) + Tanh.  K == 1, so a broadcasted multiply (VPU) instead of a
    # degenerate matmul:  w0 (H_PAD,1) * t (1,TN) + b0 (H_PAD,1)  ->  (H_PAD, TN)
    h = jnp.tanh(w0_ref[...] * t + b0_ref[...])               # (H_PAD, TN)

    # ResBlocks (statically unrolled): out = tanh(W @ x + b) + x.  Tiny MXU matmuls; the
    # straight-line unroll lets the LLO scheduler interleave MXU pushes with the previous
    # block's EUP tanh (no barriers / delays between blocks).
    for i in range(NUM_RES):
        w = wres_ref[i]                                       # (H_PAD, H_PAD) static index
        b = bres_ref[i]                                       # (H_PAD, 1)
        z = jnp.dot(w, h, preferred_element_type=jnp.float32) + b
        h = jnp.tanh(z) + h                                   # (H_PAD, TN)

    # Final Linear(H, 3)
    p = jnp.dot(w4_ref[...], h, preferred_element_type=jnp.float32) + b4_ref[...]  # (3, TN)

    # sigmoid gating + per-parameter scaling: row 0 -> *0.5 (beta), rows 1,2 -> *0.1.
    row = jax.lax.broadcasted_iota(jnp.int32, p.shape, 0)
    scale = jnp.where(row == 0, 0.5, 0.1)
    out_ref[...] = jax.nn.sigmoid(p) * scale                  # (3, TN) lane-dense store


def _xavier_uniform(key, out_features, in_features, dtype=jnp.float32):
    # Matches torch.nn.init.xavier_uniform_ (gain=1): U(-a, a), a = sqrt(6/(fan_in+fan_out)).
    a = math.sqrt(6.0 / (in_features + out_features))
    return jax.random.uniform(key, (out_features, in_features), dtype=dtype,
                              minval=-a, maxval=a)


def init_paramnn_params(key):
    """Unpadded parameters in PyTorch orientation: W (out, in), bias as an (out, 1) column."""
    keys = jax.random.split(key, 2 + NUM_RES)
    params = []
    params.append(_xavier_uniform(keys[0], HIDDEN, 1))                 # w0
    params.append(jnp.zeros((HIDDEN, 1), jnp.float32))                 # b0
    for i in range(NUM_RES):
        params.append(_xavier_uniform(keys[1 + i], HIDDEN, HIDDEN))    # w_res_i
        params.append(jnp.zeros((HIDDEN, 1), jnp.float32))             # b_res_i
    params.append(_xavier_uniform(keys[1 + NUM_RES], OUT_DIM, HIDDEN)) # w4
    params.append(jnp.zeros((OUT_DIM, 1), jnp.float32))                # b4
    return params


def _pack_params(params):
    """Zero-pad hidden dim 20 -> 24 and stack the ResBlock weights/biases."""
    (w0, b0, w1, b1, w2, b2, w3, b3, w4, b4) = params
    w0p = jnp.zeros((H_PAD, 1), jnp.float32).at[:HIDDEN, :].set(w0)
    b0p = jnp.zeros((H_PAD, 1), jnp.float32).at[:HIDDEN, :].set(b0)
    wresp = jnp.zeros((NUM_RES, H_PAD, H_PAD), jnp.float32)
    bresp = jnp.zeros((NUM_RES, H_PAD, 1), jnp.float32)
    for i, (w, b) in enumerate(((w1, b1), (w2, b2), (w3, b3))):
        wresp = wresp.at[i, :HIDDEN, :HIDDEN].set(w)
        bresp = bresp.at[i, :HIDDEN, :].set(b)
    w4p = jnp.zeros((OUT_DIM, H_PAD), jnp.float32).at[:, :HIDDEN].set(w4)
    b4p = b4
    return w0p, b0p, wresp, bresp, w4p, b4p


def _choose_block_n(n, max_block=MAX_BLOCK_N):
    """Lane tile: multiple of 128, <= max_block, and >= 2 grid steps when n allows (megacore)."""
    if n <= 128:
        return 128
    half = -(-n // 2)                        # ceil(n / 2)
    half_rounded = ((half + 127) // 128) * 128
    return min(max_block, half_rounded)


def paramnn_forward(t, params, *, block_n=None):
    """t: (N,) or (N, 1) float32 times -> (beta, gamma, mu), each (N,) float32."""
    t = jnp.asarray(t, jnp.float32).reshape(-1)
    n = t.shape[0]
    if block_n is None:
        block_n = _choose_block_n(n)
    n_blocks = pl.cdiv(n, block_n)
    n_pad = n_blocks * block_n

    # Batch on lanes: (1, N_pad) row, zero-padded to a multiple of the lane tile.
    t_row = jnp.zeros((1, n_pad), jnp.float32).at[0, :n].set(t)

    w0p, b0p, wresp, bresp, w4p, b4p = _pack_params(params)

    out = pl.pallas_call(
        paramnn_kernel,
        out_shape=jax.ShapeDtypeStruct((OUT_DIM, n_pad), jnp.float32),
        grid=(n_blocks,),
        in_specs=[
            pl.BlockSpec((1, block_n), lambda i: (0, i)),          # t tile (lane-dense)
            pl.BlockSpec(w0p.shape, lambda i: (0, 0)),             # VMEM-resident weights
            pl.BlockSpec(b0p.shape, lambda i: (0, 0)),
            pl.BlockSpec(wresp.shape, lambda i: (0, 0, 0)),
            pl.BlockSpec(bresp.shape, lambda i: (0, 0, 0)),
            pl.BlockSpec(w4p.shape, lambda i: (0, 0)),
            pl.BlockSpec(b4p.shape, lambda i: (0, 0)),
        ],
        out_specs=pl.BlockSpec((OUT_DIM, block_n), lambda i: (0, i)),
        compiler_params=pltpu.CompilerParams(dimension_semantics=("parallel",)),
    )(t_row, w0p, b0p, wresp, bresp, w4p, b4p)

    beta = out[0, :n]
    gamma = out[1, :n]
    mu = out[2, :n]
    return beta, gamma, mu


def paramnn_reference(t, params):
    """Pure-JAX reference (PyTorch-style x @ W.T + b) for a correctness check."""
    (w0, b0, w1, b1, w2, b2, w3, b3, w4, b4) = params
    x = jnp.asarray(t, jnp.float32).reshape(-1, 1)            # (N, 1)
    h = jnp.tanh(x @ w0.T + b0.T)                             # (N, H)
    for w, b in ((w1, b1), (w2, b2), (w3, b3)):
        h = jnp.tanh(h @ w.T + b.T) + h
    p = h @ w4.T + b4.T                                       # (N, 3)
    s = jax.nn.sigmoid(p)
    return s[:, 0] * 0.5, s[:, 1] * 0.1, s[:, 2] * 0.1


if __name__ == "__main__":
    key = jax.random.PRNGKey(0)
    pkey, tkey = jax.random.split(key)

    params = init_paramnn_params(pkey)

    # Small batch of time points; 300 is deliberately not a multiple of 128, and with the
    # adaptive tile (block_n=256) it exercises padding plus a 2-step grid (megacore path).
    N = 300
    t = jax.random.uniform(tkey, (N, 1), dtype=jnp.float32)   # times in [0, 1)

    beta, gamma, mu = paramnn_forward(t, params)
    jax.block_until_ready((beta, gamma, mu))

    # correctness check against pure-JAX reference
    rb, rg, rm = paramnn_reference(t, params)
    assert beta.shape == (N,) and gamma.shape == (N,) and mu.shape == (N,)
    assert jnp.allclose(beta, rb, atol=1e-5, rtol=1e-5)
    assert jnp.allclose(gamma, rg, atol=1e-5, rtol=1e-5)
    assert jnp.allclose(mu, rm, atol=1e-5, rtol=1e-5)

    print("KERNEL_OK")
</pallas_src>

<mosaic_0001>
module attributes {stable_mosaic.version = 11 : i64} {
  func.func @paramnn_kernel(%arg0: i32, %arg1: memref<1x256xf32, #tpu.memory_space<vmem>>, %arg2: memref<24x1xf32, #tpu.memory_space<vmem>>, %arg3: memref<24x1xf32, #tpu.memory_space<vmem>>, %arg4: memref<3x24x24xf32, #tpu.memory_space<vmem>>, %arg5: memref<3x24x1xf32, #tpu.memory_space<vmem>>, %arg6: memref<3x24xf32, #tpu.memory_space<vmem>>, %arg7: memref<3x1xf32, #tpu.memory_space<vmem>>, %arg8: memref<3x256xf32, #tpu.memory_space<vmem>>) attributes {dimension_semantics = [#tpu.dimension_semantics<parallel>], iteration_bounds = array<i64: 2>, scalar_prefetch = 0 : i64, scratch_operands = 0 : i64, tpu.core_type = #tpu.core_type<tc>, window_params = [{transform_indices = @transform_0, window_bounds = array<i64: 1, 256>}, {pipeline_mode = #tpu.pipeline_mode<synchronous>, transform_indices = @transform_1, window_bounds = array<i64: 24, 1>}, {pipeline_mode = #tpu.pipeline_mode<synchronous>, transform_indices = @transform_2, window_bounds = array<i64: 24, 1>}, {pipeline_mode = #tpu.pipeline_mode<synchronous>, transform_indices = @transform_3, window_bounds = array<i64: 3, 24, 24>}, {pipeline_mode = #tpu.pipeline_mode<synchronous>, transform_indices = @transform_4, window_bounds = array<i64: 3, 24, 1>}, {pipeline_mode = #tpu.pipeline_mode<synchronous>, transform_indices = @transform_5, window_bounds = array<i64: 3, 24>}, {pipeline_mode = #tpu.pipeline_mode<synchronous>, transform_indices = @transform_6, window_bounds = array<i64: 3, 1>}, {transform_indices = @transform_7, window_bounds = array<i64: 3, 256>}]} {
    %c0 = arith.constant 0 : index
    %c0_0 = arith.constant 0 : index
    %0 = vector.load %arg1[%c0, %c0_0] : memref<1x256xf32, #tpu.memory_space<vmem>>, vector<1x256xf32>
    %c0_1 = arith.constant 0 : index
    %c0_2 = arith.constant 0 : index
    %1 = vector.load %arg2[%c0_1, %c0_2] : memref<24x1xf32, #tpu.memory_space<vmem>>, vector<24x1xf32>
    %2 = vector.broadcast %1 : vector<24x1xf32> to vector<24x256xf32>
    %3 = vector.broadcast %0 : vector<1x256xf32> to vector<24x256xf32>
    %4 = arith.mulf %2, %3 : vector<24x256xf32>
    %c0_3 = arith.constant 0 : index
    %c0_4 = arith.constant 0 : index
    %5 = vector.load %arg3[%c0_3, %c0_4] : memref<24x1xf32, #tpu.memory_space<vmem>>, vector<24x1xf32>
    %6 = vector.broadcast %5 : vector<24x1xf32> to vector<24x256xf32>
    %7 = arith.addf %4, %6 : vector<24x256xf32>
    %8 = math.tanh %7 : vector<24x256xf32>
    %c0_5 = arith.constant 0 : index
    %c0_6 = arith.constant 0 : index
    %c0_7 = arith.constant 0 : index
    %9 = vector.load %arg4[%c0_5, %c0_6, %c0_7] : memref<3x24x24xf32, #tpu.memory_space<vmem>>, vector<1x24x24xf32>
    %10 = vector.shape_cast %9 : vector<1x24x24xf32> to vector<24x24xf32>
    %c0_8 = arith.constant 0 : index
    %c0_9 = arith.constant 0 : index
    %c0_10 = arith.constant 0 : index
    %11 = vector.load %arg5[%c0_8, %c0_9, %c0_10] : memref<3x24x1xf32, #tpu.memory_space<vmem>>, vector<1x24x1xf32>
    %12 = vector.shape_cast %11 : vector<1x24x1xf32> to vector<24x1xf32>
    %cst = arith.constant dense<0.000000e+00> : vector<24x256xf32>
    %13 = tpu.matmul %10, %8, %cst {dimension_numbers = #tpu.dot_dimension_numbers<[1], [0], [0], [1], [0, 0, 1, 1], [], []>} : vector<24x24xf32>, vector<24x256xf32>, vector<24x256xf32> -> vector<24x256xf32>
    %14 = vector.broadcast %12 : vector<24x1xf32> to vector<24x256xf32>
    %15 = arith.addf %13, %14 : vector<24x256xf32>
    %16 = math.tanh %15 : vector<24x256xf32>
    %17 = arith.addf %16, %8 : vector<24x256xf32>
    %c1 = arith.constant 1 : index
    %c0_11 = arith.constant 0 : index
    %c0_12 = arith.constant 0 : index
    %18 = vector.load %arg4[%c1, %c0_11, %c0_12] : memref<3x24x24xf32, #tpu.memory_space<vmem>>, vector<1x24x24xf32>
    %19 = vector.shape_cast %18 : vector<1x24x24xf32> to vector<24x24xf32>
    %c1_13 = arith.constant 1 : index
    %c0_14 = arith.constant 0 : index
    %c0_15 = arith.constant 0 : index
    %20 = vector.load %arg5[%c1_13, %c0_14, %c0_15] : memref<3x24x1xf32, #tpu.memory_space<vmem>>, vector<1x24x1xf32>
    %21 = vector.shape_cast %20 : vector<1x24x1xf32> to vector<24x1xf32>
    %cst_16 = arith.constant dense<0.000000e+00> : vector<24x256xf32>
    %22 = tpu.matmul %19, %17, %cst_16 {dimension_numbers = #tpu.dot_dimension_numbers<[1], [0], [0], [1], [0, 0, 1, 1], [], []>} : vector<24x24xf32>, vector<24x256xf32>, vector<24x256xf32> -> vector<24x256xf32>
    %23 = vector.broadcast %21 : vector<24x1xf32> to vector<24x256xf32>
    %24 = arith.addf %22, %23 : vector<24x256xf32>
    %25 = math.tanh %24 : vector<24x256xf32>
    %26 = arith.addf %25, %17 : vector<24x256xf32>
    %c2 = arith.constant 2 : index
    %c0_17 = arith.constant 0 : index
    %c0_18 = arith.constant 0 : index
    %27 = vector.load %arg4[%c2, %c0_17, %c0_18] : memref<3x24x24xf32, #tpu.memory_space<vmem>>, vector<1x24x24xf32>
    %28 = vector.shape_cast %27 : vector<1x24x24xf32> to vector<24x24xf32>
    %c2_19 = arith.constant 2 : index
    %c0_20 = arith.constant 0 : index
    %c0_21 = arith.constant 0 : index
    %29 = vector.load %arg5[%c2_19, %c0_20, %c0_21] : memref<3x24x1xf32, #tpu.memory_space<vmem>>, vector<1x24x1xf32>
    %30 = vector.shape_cast %29 : vector<1x24x1xf32> to vector<24x1xf32>
    %cst_22 = arith.constant dense<0.000000e+00> : vector<24x256xf32>
    %31 = tpu.matmul %28, %26, %cst_22 {dimension_numbers = #tpu.dot_dimension_numbers<[1], [0], [0], [1], [0, 0, 1, 1], [], []>} : vector<24x24xf32>, vector<24x256xf32>, vector<24x256xf32> -> vector<24x256xf32>
    %32 = vector.broadcast %30 : vector<24x1xf32> to vector<24x256xf32>
    %33 = arith.addf %31, %32 : vector<24x256xf32>
    %34 = math.tanh %33 : vector<24x256xf32>
    %35 = arith.addf %34, %26 : vector<24x256xf32>
    %c0_23 = arith.constant 0 : index
    %c0_24 = arith.constant 0 : index
    %36 = vector.load %arg6[%c0_23, %c0_24] : memref<3x24xf32, #tpu.memory_space<vmem>>, vector<3x24xf32>
    %cst_25 = arith.constant dense<0.000000e+00> : vector<3x256xf32>
    %37 = tpu.matmul %36, %35, %cst_25 {dimension_numbers = #tpu.dot_dimension_numbers<[1], [0], [0], [1], [0, 0, 1, 1], [], []>} : vector<3x24xf32>, vector<24x256xf32>, vector<3x256xf32> -> vector<3x256xf32>
    %c0_26 = arith.constant 0 : index
    %c0_27 = arith.constant 0 : index
    %38 = vector.load %arg7[%c0_26, %c0_27] : memref<3x1xf32, #tpu.memory_space<vmem>>, vector<3x1xf32>
    %39 = vector.broadcast %38 : vector<3x1xf32> to vector<3x256xf32>
    %40 = arith.addf %37, %39 : vector<3x256xf32>
    %41 = tpu.iota {dimensions = array<i32: 0>} : vector<3x256xi32>
    %c0_i32 = arith.constant 0 : i32
    %42 = vector.broadcast %c0_i32 : i32 to vector<3x256xi32>
    %43 = arith.cmpi eq, %41, %42 : vector<3x256xi32>
    %cst_28 = arith.constant 5.000000e-01 : f32
    %cst_29 = arith.constant 1.000000e-01 : f32
    %44 = vector.broadcast %cst_28 : f32 to vector<3x256xf32>
    %45 = vector.broadcast %cst_29 : f32 to vector<3x256xf32>
    %46 = arith.select %43, %44, %45 : vector<3x256xi1>, vector<3x256xf32>
    %47 = arith.negf %40 : vector<3x256xf32>
    %48 = math.exp %47 : vector<3x256xf32>
    %cst_30 = arith.constant 1.000000e+00 : f32
    %49 = vector.broadcast %cst_30 : f32 to vector<3x256xf32>
    %50 = arith.addf %49, %48 : vector<3x256xf32>
    %51 = arith.divf %49, %50 : vector<3x256xf32>
    %52 = arith.mulf %51, %46 : vector<3x256xf32>
    %c0_31 = arith.constant 0 : index
    %c0_32 = arith.constant 0 : index
    %53 = vector.load %arg8[%c0_31, %c0_32] : memref<3x256xf32, #tpu.memory_space<vmem>>, vector<3x256xf32>
    tpu.vector_store %arg8[%c0_31, %c0_32], %52 {strides = array<i32>} : memref<3x256xf32, #tpu.memory_space<vmem>>, vector<3x256xf32>,
    return
  }
  func.func @transform_0(%arg0: i32) -> (i32, i32) {
    %c0_i32 = arith.constant 0 : i32
    %c0_i32_0 = arith.constant 0 : i32
    return %c0_i32, %arg0 : i32, i32
  }
  func.func @transform_1(%arg0: i32) -> (i32, i32) {
    %c0_i32 = arith.constant 0 : i32
    %c0_i32_0 = arith.constant 0 : i32
    %c0_i32_1 = arith.constant 0 : i32
    return %c0_i32, %c0_i32_0 : i32, i32
  }
  func.func @transform_2(%arg0: i32) -> (i32, i32) {
    %c0_i32 = arith.constant 0 : i32
    %c0_i32_0 = arith.constant 0 : i32
    %c0_i32_1 = arith.constant 0 : i32
    return %c0_i32, %c0_i32_0 : i32, i32
  }
  func.func @transform_3(%arg0: i32) -> (i32, i32, i32) {
    %c0_i32 = arith.constant 0 : i32
    %c0_i32_0 = arith.constant 0 : i32
    %c0_i32_1 = arith.constant 0 : i32
    %c0_i32_2 = arith.constant 0 : i32
    return %c0_i32, %c0_i32_0, %c0_i32_1 : i32, i32, i32
  }
  func.func @transform_4(%arg0: i32) -> (i32, i32, i32) {
    %c0_i32 = arith.constant 0 : i32
    %c0_i32_0 = arith.constant 0 : i32
    %c0_i32_1 = arith.constant 0 : i32
    %c0_i32_2 = arith.constant 0 : i32
    return %c0_i32, %c0_i32_0, %c0_i32_1 : i32, i32, i32
  }
  func.func @transform_5(%arg0: i32) -> (i32, i32) {
    %c0_i32 = arith.constant 0 : i32
    %c0_i32_0 = arith.constant 0 : i32
    %c0_i32_1 = arith.constant 0 : i32
    return %c0_i32, %c0_i32_0 : i32, i32
  }
  func.func @transform_6(%arg0: i32) -> (i32, i32) {
    %c0_i32 = arith.constant 0 : i32
    %c0_i32_0 = arith.constant 0 : i32
    %c0_i32_1 = arith.constant 0 : i32
    return %c0_i32, %c0_i32_0 : i32, i32
  }
  func.func @transform_7(%arg0: i32) -> (i32, i32) {
    %c0_i32 = arith.constant 0 : i32
    %c0_i32_0 = arith.constant 0 : i32
    return %c0_i32, %arg0 : i32, i32
  }
}

</mosaic_0001>

<llo_original>
// kernel: tpu_custom_call.1
$region0: #{tpu_custom_call.1}
  #allocation0 [shape = 'u32[]', space=smem, size = 0x4, offset = 0x4, fixed_abs, tag = 'smem constant byte address 0x4 - core index']
  #allocation1 [shape = 'u32[72,128]{1,0:T(1,128)}', space=vmem, size = 0x9000, scoped, tag = 'internal scratch']
  %s0 = inlined_call_operand.vmem [shape: f32[1,512], index: 0, kind: input, shape index: {}]
  %s1 = inlined_call_operand.vmem [shape: f32[24,1], index: 1, kind: input, shape index: {}]
  %s2 = inlined_call_operand.vmem [shape: f32[24,1], index: 2, kind: input, shape index: {}]
  %s3 = inlined_call_operand.vmem [shape: f32[3,24,24], index: 3, kind: input, shape index: {}]
  %s4 = inlined_call_operand.vmem [shape: f32[3,24,1], index: 4, kind: input, shape index: {}]
  %s5 = inlined_call_operand.vmem [shape: f32[3,24], index: 5, kind: input, shape index: {}]
  %s6 = inlined_call_operand.vmem [shape: f32[3,1], index: 6, kind: input, shape index: {}]
  %s7 = inlined_call_operand.hbm [shape: f32[3,512], index: 7, kind: output, shape index: {}]
  %s8 = sld [smem:[#allocation0]]
  $region61: #{tpu_custom_call.1} parent=0
    _
  %s10 = ssub.s32 1, %s8
  %s11 = scalar_select 0, %s10, %s8
  $region1: #{tpu_custom_call.1} parent=0
    #allocation2 [shape = 'u8[8192]{0}', space=vmem, size = 0x2000, scoped, tag = 'output window, operand 0']
    #allocation3 [shape = 's32[2]{0}', space=sflag, size = 0x8, scoped, tag = 'scoped memory for tpu_custom_call.1']
    %12 = vsyncpa [#allocation3], 0
    %s13 = scalar_lea.sflag [#allocation3], 1
    %14 = vsyncpa %s13, 0
    loop: start=0, step=1, limit=4
    $region2: #{tpu_custom_call.1} parent=1 // loop_pre_header
      _
    $region3: #{tpu_custom_call.1} parent=1 // loop_header
      %s16 = sphi 0, %s20
      %p17 = scmp.ge.s32.totalorder %s16, 4
      %s26 = sphi 0, %s28
      %s29 = sphi 0, %s26
      %s30 = sphi 0, %s29
      %s46 = sphi 0, %s30
      %s50 = sphi 0, %s50
      %s52 = sphi 0, %s50
      %s53 = sphi 0, %s52
      %s67 = sphi 0, %s53
      %s71 = sphi 0, %s71
      %s73 = sphi 0, %s71
      %s74 = sphi 0, %s73
      %s88 = sphi 0, %s74
      %s92 = sphi 0, %s92
      %s94 = sphi 0, %s92
      %s95 = sphi 0, %s94
      %s109 = sphi 0, %s95
      %s113 = sphi 0, %s113
      %s115 = sphi 0, %s113
      %s116 = sphi 0, %s115
      %s130 = sphi 0, %s116
      %s134 = sphi 0, %s134
      %s136 = sphi 0, %s134
      %s137 = sphi 0, %s136
      %s151 = sphi 0, %s137
      %s155 = sphi 0, %s155
      %s157 = sphi 0, %s155
      %s158 = sphi 0, %s157
      %s172 = sphi 0, %s158
      %s178 = sphi 0, %s180
      %s181 = sphi 0, %s178
      %s182 = sphi 0, %s181
      %s198 = sphi 0, %s182
    $region4: #{tpu_custom_call.1} parent=1 // loop_header_branch
      %19 = sbr.rel (%p17) target = $region8
    $region5: #{tpu_custom_call.1} parent=1 // loop_body
      %s21 = ssub.s32 %s16, 1
      %s22 = ssub.s32 %s16, 2
      %s23 = sadd.s32 %s16, 1
      %s24 = ssub.s32 %s16, %s23
      %p25 = scmp.eq.s32.totalorder %s24, 0
      %s27 = sadd.s32 %s26, 1
      %s28 = scalar_select %p25, %s26, %s27
      %p31 = pneg %p25
      %p32 = scmp.eq.s32.totalorder %s16, 1
      %p33 = por %p31, %p32
      %p34 = scmp.ne.s32.totalorder %s26, %s29
      %p35 = scmp.eq.s32.totalorder %s16, 0
      %p36 = por %p34, %p35
      %p37 = scmp.ne.s32.totalorder %s26, %s29
      %p38 = scmp.eq.s32.totalorder %s21, 1
      %p39 = por %p37, %p38
      %p40 = scmp.ne.s32.totalorder %s29, %s30
      %p41 = scmp.eq.s32.totalorder %s21, 0
      %p42 = por %p40, %p41
      %p43 = scmp.ne.s32.totalorder %s29, %s30
      %p44 = scmp.eq.s32.totalorder %s22, 1
      %p45 = por %p43, %p44
      %p47 = scmp.ne.s32.totalorder %s30, %s46
      %p48 = scmp.eq.s32.totalorder %s22, 0
      %p49 = por %p47, %p48
      %s51 = sadd.s32 %s50, 1
      %p54 = scmp.eq.s32.totalorder %s16, 1
      %p55 = scmp.ne.s32.totalorder %s50, %s52
      %p56 = scmp.eq.s32.totalorder %s16, 0
      %p57 = por %p55, %p56
      %p58 = scmp.ne.s32.totalorder %s50, %s52
      %p59 = scmp.eq.s32.totalorder %s21, 1
      %p60 = por %p58, %p59
      %p61 = scmp.ne.s32.totalorder %s52, %s53
      %p62 = scmp.eq.s32.totalorder %s21, 0
      %p63 = por %p61, %p62
      %p64 = scmp.ne.s32.totalorder %s52, %s53
      %p65 = scmp.eq.s32.totalorder %s22, 1
      %p66 = por %p64, %p65
      %p68 = scmp.ne.s32.totalorder %s53, %s67
      %p69 = scmp.eq.s32.totalorder %s22, 0
      %p70 = por %p68, %p69
      %s72 = sadd.s32 %s71, 1
      %p75 = scmp.eq.s32.totalorder %s16, 1
      %p76 = scmp.ne.s32.totalorder %s71, %s73
      %p77 = scmp.eq.s32.totalorder %s16, 0
      %p78 = por %p76, %p77
      %p79 = scmp.ne.s32.totalorder %s71, %s73
      %p80 = scmp.eq.s32.totalorder %s21, 1
      %p81 = por %p79, %p80
      %p82 = scmp.ne.s32.totalorder %s73, %s74
      %p83 = scmp.eq.s32.totalorder %s21, 0
      %p84 = por %p82, %p83
      %p85 = scmp.ne.s32.totalorder %s73, %s74
      %p86 = scmp.eq.s32.totalorder %s22, 1
      %p87 = por %p85, %p86
      %p89 = scmp.ne.s32.totalorder %s74, %s88
      %p90 = scmp.eq.s32.totalorder %s22, 0
      %p91 = por %p89, %p90
      %s93 = sadd.s32 %s92, 1
      %p96 = scmp.eq.s32.totalorder %s16, 1
      %p97 = scmp.ne.s32.totalorder %s92, %s94
      %p98 = scmp.eq.s32.totalorder %s16, 0
      %p99 = por %p97, %p98
      %p100 = scmp.ne.s32.totalorder %s92, %s94
      %p101 = scmp.eq.s32.totalorder %s21, 1
      %p102 = por %p100, %p101
      %p103 = scmp.ne.s32.totalorder %s94, %s95
      %p104 = scmp.eq.s32.totalorder %s21, 0
      %p105 = por %p103, %p104
      %p106 = scmp.ne.s32.totalorder %s94, %s95
      %p107 = scmp.eq.s32.totalorder %s22, 1
      %p108 = por %p106, %p107
      %p110 = scmp.ne.s32.totalorder %s95, %s109
      %p111 = scmp.eq.s32.totalorder %s22, 0
      %p112 = por %p110, %p111
      %s114 = sadd.s32 %s113, 1
      %p117 = scmp.eq.s32.totalorder %s16, 1
      %p118 = scmp.ne.s32.totalorder %s113, %s115
      %p119 = scmp.eq.s32.totalorder %s16, 0
      %p120 = por %p118, %p119
      %p121 = scmp.ne.s32.totalorder %s113, %s115
      %p122 = scmp.eq.s32.totalorder %s21, 1
      %p123 = por %p121, %p122
      %p124 = scmp.ne.s32.totalorder %s115, %s116
      %p125 = scmp.eq.s32.totalorder %s21, 0
      %p126 = por %p124, %p125
      %p127 = scmp.ne.s32.totalorder %s115, %s116
      %p128 = scmp.eq.s32.totalorder %s22, 1
      %p129 = por %p127, %p128
      %p131 = scmp.ne.s32.totalorder %s116, %s130
      %p132 = scmp.eq.s32.totalorder %s22, 0
      %p133 = por %p131, %p132
      %s135 = sadd.s32 %s134, 1
      %p138 = scmp.eq.s32.totalorder %s16, 1
      %p139 = scmp.ne.s32.totalorder %s134, %s136
      %p140 = scmp.eq.s32.totalorder %s16, 0
      %p141 = por %p139, %p140
      %p142 = scmp.ne.s32.totalorder %s134, %s136
      %p143 = scmp.eq.s32.totalorder %s21, 1
      %p144 = por %p142, %p143
      %p145 = scmp.ne.s32.totalorder %s136, %s137
      %p146 = scmp.eq.s32.totalorder %s21, 0
      %p147 = por %p145, %p146
      %p148 = scmp.ne.s32.totalorder %s136, %s137
      %p149 = scmp.eq.s32.totalorder %s22, 1
      %p150 = por %p148, %p149
      %p152 = scmp.ne.s32.totalorder %s137, %s151
      %p153 = scmp.eq.s32.totalorder %s22, 0
      %p154 = por %p152, %p153
      %s156 = sadd.s32 %s155, 1
      %p159 = scmp.eq.s32.totalorder %s16, 1
      %p160 = scmp.ne.s32.totalorder %s155, %s157
      %p161 = scmp.eq.s32.totalorder %s16, 0
      %p162 = por %p160, %p161
      %p163 = scmp.ne.s32.totalorder %s155, %s157
      %p164 = scmp.eq.s32.totalorder %s21, 1
      %p165 = por %p163, %p164
      %p166 = scmp.ne.s32.totalorder %s157, %s158
      %p167 = scmp.eq.s32.totalorder %s21, 0
      %p168 = por %p166, %p167
      %p169 = scmp.ne.s32.totalorder %s157, %s158
      %p170 = scmp.eq.s32.totalorder %s22, 1
      %p171 = por %p169, %p170
      %p173 = scmp.ne.s32.totalorder %s158, %s172
      %p174 = scmp.eq.s32.totalorder %s22, 0
      %p175 = por %p173, %p174
      %s176 = ssub.s32 %s16, %s23
      %p177 = scmp.eq.s32.totalorder %s176, 0
      %s179 = sadd.s32 %s178, 1
      %s180 = scalar_select %p177, %s178, %s179
      %p183 = pneg %p177
      %p184 = scmp.eq.s32.totalorder %s16, 1
      %p185 = por %p183, %p184
      %p186 = scmp.ne.s32.totalorder %s178, %s181
      %p187 = scmp.eq.s32.totalorder %s16, 0
      %p188 = por %p186, %p187
      %p189 = scmp.ne.s32.totalorder %s178, %s181
      %p190 = scmp.eq.s32.totalorder %s21, 1
      %p191 = por %p189, %p190
      %p192 = scmp.ne.s32.totalorder %s181, %s182
      %p193 = scmp.eq.s32.totalorder %s21, 0
      %p194 = por %p192, %p193
      %p195 = scmp.ne.s32.totalorder %s181, %s182
      %p196 = scmp.eq.s32.totalorder %s22, 1
      %p197 = por %p195, %p196
      %p199 = scmp.ne.s32.totalorder %s182, %s198
      %p200 = scmp.eq.s32.totalorder %s22, 0
      %p201 = por %p199, %p200
      %p202 = scmp.le.s32.totalorder 1, %s16
      %p203 = scmp.lt.s32.totalorder %s16, 3
      %p204 = pnand %p202, %p203
      %p205 = pneg %p204
      // Predicated region
      $region9: #{tpu_custom_call.1} parent=5 // pred_check
        _
      $region10: #{tpu_custom_call.1} parent=5 // pred_check_branch
        %207 = sbr.rel (%p204) target = $region12
      $region11: #{tpu_custom_call.1} parent=5 // pred_region
        %s208 = ssub.s32 %s16, 1
        // Predicated region
        $region13: #{tpu_custom_call.1} parent=11 // pred_check
          %p209 = pneg %p63
        $region14: #{tpu_custom_call.1} parent=11 // pred_check_branch
          %211 = sbr.rel (%p209) target = $region16
        $region15: #{tpu_custom_call.1} parent=11 // pred_region
          _
        $region16: #{tpu_custom_call.1} parent=11 // pred_fallthru
          _
        // Predicated region
        $region17: #{tpu_custom_call.1} parent=11 // pred_check
          %p212 = pneg %p84
        $region18: #{tpu_custom_call.1} parent=11 // pred_check_branch
          %214 = sbr.rel (%p212) target = $region20
        $region19: #{tpu_custom_call.1} parent=11 // pred_region
          _
        $region20: #{tpu_custom_call.1} parent=11 // pred_fallthru
          _
        // Predicated region
        $region21: #{tpu_custom_call.1} parent=11 // pred_check
          %p215 = pneg %p105
        $region22: #{tpu_custom_call.1} parent=11 // pred_check_branch
          %217 = sbr.rel (%p215) target = $region24
        $region23: #{tpu_custom_call.1} parent=11 // pred_region
          _
        $region24: #{tpu_custom_call.1} parent=11 // pred_fallthru
          _
        // Predicated region
        $region25: #{tpu_custom_call.1} parent=11 // pred_check
          %p218 = pneg %p126
        $region26: #{tpu_custom_call.1} parent=11 // pred_check_branch
          %220 = sbr.rel (%p218) target = $region28
        $region27: #{tpu_custom_call.1} parent=11 // pred_region
          _
        $region28: #{tpu_custom_call.1} parent=11 // pred_fallthru
          _
        // Predicated region
        $region29: #{tpu_custom_call.1} parent=11 // pred_check
          %p221 = pneg %p147
        $region30: #{tpu_custom_call.1} parent=11 // pred_check_branch
          %223 = sbr.rel (%p221) target = $region32
        $region31: #{tpu_custom_call.1} parent=11 // pred_region
          _
        $region32: #{tpu_custom_call.1} parent=11 // pred_fallthru
          _
        // Predicated region
        $region33: #{tpu_custom_call.1} parent=11 // pred_check
          %p224 = pneg %p168
        $region34: #{tpu_custom_call.1} parent=11 // pred_check_branch
          %226 = sbr.rel (%p224) target = $region36
        $region35: #{tpu_custom_call.1} parent=11 // pred_region
          _
        $region36: #{tpu_custom_call.1} parent=11 // pred_fallthru
          _
      $region12: #{tpu_custom_call.1} parent=5 // pred_fallthru
        _
      %p227 = scmp.lt.s32.totalorder %s16, 2
      // Predicated region
      $region37: #{tpu_custom_call.1} parent=5 // pred_check
        %p228 = pneg %p227
      $region38: #{tpu_custom_call.1} parent=5 // pred_check_branch
        %230 = sbr.rel (%p228) target = $region40
      $region39: #{tpu_custom_call.1} parent=5 // pred_region
        // Predicated region
        $region41: #{tpu_custom_call.1} parent=39 // pred_check
          %p231 = pneg %p36
        $region42: #{tpu_custom_call.1} parent=39 // pred_check_branch
          %233 = sbr.rel (%p231) target = $region44
        $region43: #{tpu_custom_call.1} parent=39 // pred_region
          %s234 = smul.u32 2, %s16
          %p235 = scmp.lt.s32.totalorder %s234, 3
          %s236 = scalar_select %p235, %s234, 3
          %s237 = scalar_lea.vmem %s0, %s236
          %s238 = smul.u32 2, %s16
        $region44: #{tpu_custom_call.1} parent=39 // pred_fallthru
          _
      $region40: #{tpu_custom_call.1} parent=5 // pred_fallthru
        _
      %p239 = scmp.le.s32.totalorder 1, %s16
      %p240 = scmp.lt.s32.totalorder %s16, 3
      %p241 = pnand %p239, %p240
      %p242 = pneg %p241
      // Predicated region
      $region45: #{tpu_custom_call.1} parent=5 // pred_check
        _
      $region46: #{tpu_custom_call.1} parent=5 // pred_check_branch
        %244 = sbr.rel (%p241) target = $region48
      $region47: #{tpu_custom_call.1} parent=5 // pred_region
        %s245 = ssub.s32 %s16, 1
        %s246 = smul.u32 2, %s21
        %p247 = scmp.lt.s32.totalorder %s246, 3
        %s248 = scalar_select %p247, %s246, 3
        %s249 = scalar_lea.vmem %s0, %s248
        %p250 = pneg %p42
        %p251 = pneg %p39
        %p252 = pneg %p63
        %p253 = pneg %p60
        %p254 = pneg %p84
        %p255 = pneg %p81
        %p256 = pneg %p105
        %p257 = pneg %p102
        %p258 = pneg %p126
        %p259 = pneg %p123
        %p260 = pneg %p147
        %p261 = pneg %p144
        %p262 = pneg %p168
        %p263 = pneg %p165
        %p264 = pneg %p194
        %p265 = pneg %p191
        %s266 = sand.u32 %s181, 1
        %s267 = scalar_lea.sflag [#allocation3], %s266
        %s268 = sand.u32 %s181, 1
        %s269 = smul.addr %s268, 8
        %s270 = scalar_lea.vmem [#allocation2], %s269
        %s271 = smul.u32 2, %s21
        %p272 = scmp.lt.s32.totalorder %s271, 3
        %s273 = scalar_select %p272, %s271, 3
        %s274 = scalar_lea.vmem %s0, %s273
        %s275 = smul.u32 2, %s21
        %s276 = smul.u32 2, %s21
        %v277 = vld [vmem:[%s274] sm:$0x3]
        %v278 = vld [vmem:[%s1] sm:$0xff]
        %v279 = vld [vmem:[%s1 + $0x8] sm:$0xff]
        %v280 = vld [vmem:[%s1 + $0x10] sm:$0xff]
        %282 = vset.pattern.permute.xlu0 0
        %283 = vperm.xlu0 %282, %v278
        %v284 = vpop.permute.xlu0 %283
        %287 = vset.pattern.permute.xlu0 0
        %288 = vperm.xlu0 %287, %v279
        %v289 = vpop.permute.xlu0 %288
        %292 = vset.pattern.permute.xlu0 0
        %293 = vperm.xlu0 %292, %v280
        %v294 = vpop.permute.xlu0 %293
        %v297 = vperm.slane %v277, 0
        %v298 = vperm.slane %v277, 1
        %v301 = vmul.f32 %v284, %v297
        %v302 = vmul.f32 %v284, %v298
        %v303 = vmul.f32 %v289, %v297
        %v304 = vmul.f32 %v289, %v298
        %v305 = vmul.f32 %v294, %v297
        %v306 = vmul.f32 %v294, %v298
        %v307 = vld [vmem:[%s2] sm:$0xff]
        %v308 = vld [vmem:[%s2 + $0x8] sm:$0xff]
        %v309 = vld [vmem:[%s2 + $0x10] sm:$0xff]
        %311 = vset.pattern.permute.xlu0 0
        %312 = vperm.xlu0 %311, %v307
        %v313 = vpop.permute.xlu0 %312
        %316 = vset.pattern.permute.xlu0 0
        %317 = vperm.xlu0 %316, %v308
        %v318 = vpop.permute.xlu0 %317
        %321 = vset.pattern.permute.xlu0 0
        %322 = vperm.xlu0 %321, %v309
        %v323 = vpop.permute.xlu0 %322
        %v325 = vadd.f32 %v301, %v313
        %v326 = vadd.f32 %v302, %v313
        %v327 = vadd.f32 %v303, %v318
        %v328 = vadd.f32 %v304, %v318
        %v329 = vadd.f32 %v305, %v323
        %v330 = vadd.f32 %v306, %v323
        %v331 = vtanh.pop %v325
        %v332 = vtanh.pop %v326
        %v333 = vtanh.pop %v327
        %v334 = vtanh.pop %v328
        %v335 = vtanh.pop %v329
        %v336 = vtanh.pop %v330
        %v337 = vld [vmem:[%s3] sm:$0xff]
        %v338 = vld [vmem:[%s3 + $0x8] sm:$0xff]
        %v339 = vld [vmem:[%s3 + $0x10] sm:$0xff]
        %v340 = vld [vmem:[%s4] sm:$0xff]
        %v341 = vld [vmem:[%s4 + $0x8] sm:$0xff]
        %v342 = vld [vmem:[%s4 + $0x10] sm:$0xff]
        %344 = vset.pattern.permute.xlu0 0
        %345 = vperm.xlu0 %344, %v340
        %v346 = vpop.permute.xlu0 %345
        %349 = vset.pattern.permute.xlu0 0
        %350 = vperm.xlu0 %349, %v341
        %v351 = vpop.permute.xlu0 %350
        %354 = vset.pattern.permute.xlu0 0
        %355 = vperm.xlu0 %354, %v342
        %v356 = vpop.permute.xlu0 %355
        %vm358 = vcmask 195584
        %v360 = vsel %vm358, %v337, 0
        %v363 = vsel %vm358, %v338, 0
        %v366 = vsel %vm358, %v339, 0
        %368 = vmatpush.msra.mxu0 0.0
        %369 = vmatpush.msra.mxu0 0.0
        %370 = vmatpush.msra.mxu0 0.0
        %371 = vmatpush.msra.mxu0 0.0
        %372 = vmatpush.msra.mxu0 0.0
        %373 = vmatpush.msra.mxu0 0.0
        %374 = vmatpush.msra.mxu0 0.0
        %375 = vmatpush.msra.mxu0 0.0
        %376 = vmatpush.msra.mxu0 0.0
        %377 = vmatpush.msra.mxu0 0.0
        %378 = vmatpush.msra.mxu0 0.0
        %379 = vmatpush.msra.mxu0 0.0
        %380 = vmatpush.msra.mxu0 0.0
        %381 = vmatpush.msra.mxu0 %v335
        %382 = vmatpush.msra.mxu0 %v333
        %383 = vmatpush.msra.mxu0 %v331
        %384 = vmatmul.f32.gmra.mxu0 %v360
        %v385 = vpop.f32.mrf.mxu0
        %v386 = vadd.f32 %v346, %v385
        %387 = vmatmul.f32.gmra.mxu0 %v363
        %v388 = vpop.f32.mrf.mxu0
        %v389 = vadd.f32 %v351, %v388
        %390 = vmatmul.f32.gmra.mxu0 %v366
        %v391 = vpop.f32.mrf.mxu0
        %v392 = vadd.f32 %v356, %v391
        %393 = vdwg.mxu0
        %394 = vmatpush.msra.mxu0 0.0
        %395 = vmatpush.msra.mxu0 0.0
        %396 = vmatpush.msra.mxu0 0.0
        %397 = vmatpush.msra.mxu0 0.0
        %398 = vmatpush.msra.mxu0 0.0
        %399 = vmatpush.msra.mxu0 0.0
        %400 = vmatpush.msra.mxu0 0.0
        %401 = vmatpush.msra.mxu0 0.0
        %402 = vmatpush.msra.mxu0 0.0
        %403 = vmatpush.msra.mxu0 0.0
        %404 = vmatpush.msra.mxu0 0.0
        %405 = vmatpush.msra.mxu0 0.0
        %406 = vmatpush.msra.mxu0 0.0
        %407 = vmatpush.msra.mxu0 %v336
        %408 = vmatpush.msra.mxu0 %v334
        %409 = vmatpush.msra.mxu0 %v332
        %410 = vmatmul.f32.gmra.mxu0 %v360
        %v411 = vpop.f32.mrf.mxu0
        %v412 = vadd.f32 %v346, %v411
        %413 = vmatmul.f32.gmra.mxu0 %v363
        %v414 = vpop.f32.mrf.mxu0
        %v415 = vadd.f32 %v351, %v414
        %416 = vmatmul.f32.gmra.mxu0 %v366
        %v417 = vpop.f32.mrf.mxu0
        %v418 = vadd.f32 %v356, %v417
        %419 = vdwg.mxu0
        %v420 = vtanh.pop %v386
        %v421 = vtanh.pop %v412
        %v422 = vtanh.pop %v389
        %v423 = vtanh.pop %v415
        %v424 = vtanh.pop %v392
        %v425 = vtanh.pop %v418
        %v426 = vadd.f32 %v420, %v331
        %v427 = vadd.f32 %v421, %v332
        %v428 = vadd.f32 %v422, %v333
        %v429 = vadd.f32 %v423, %v334
        %v430 = vadd.f32 %v424, %v335
        %v431 = vadd.f32 %v425, %v336
        %s432 = scalar_lea.vmem %s3, 24
        %v433 = vld [vmem:[%s432] sm:$0xff]
        %v434 = vld [vmem:[%s432 + $0x8] sm:$0xff]
        %v435 = vld [vmem:[%s432 + $0x10] sm:$0xff]
        %s436 = scalar_lea.vmem %s4, 24
        %v437 = vld [vmem:[%s436] sm:$0xff]
        %v438 = vld [vmem:[%s436 + $0x8] sm:$0xff]
        %v439 = vld [vmem:[%s436 + $0x10] sm:$0xff]
        %441 = vset.pattern.permute.xlu0 0
        %442 = vperm.xlu0 %441, %v437
        %v443 = vpop.permute.xlu0 %442
        %446 = vset.pattern.permute.xlu0 0
        %447 = vperm.xlu0 %446, %v438
        %v448 = vpop.permute.xlu0 %447
        %451 = vset.pattern.permute.xlu0 0
        %452 = vperm.xlu0 %451, %v439
        %v453 = vpop.permute.xlu0 %452
        %v456 = vsel %vm358, %v433, 0
        %v459 = vsel %vm358, %v434, 0
        %v462 = vsel %vm358, %v435, 0
        %464 = vmatpush.msra.mxu0 0.0
        %465 = vmatpush.msra.mxu0 0.0
        %466 = vmatpush.msra.mxu0 0.0
        %467 = vmatpush.msra.mxu0 0.0
        %468 = vmatpush.msra.mxu0 0.0
        %469 = vmatpush.msra.mxu0 0.0
        %470 = vmatpush.msra.mxu0 0.0
        %471 = vmatpush.msra.mxu0 0.0
        %472 = vmatpush.msra.mxu0 0.0
        %473 = vmatpush.msra.mxu0 0.0
        %474 = vmatpush.msra.mxu0 0.0
        %475 = vmatpush.msra.mxu0 0.0
        %476 = vmatpush.msra.mxu0 0.0
        %477 = vmatpush.msra.mxu0 %v430
        %478 = vmatpush.msra.mxu0 %v428
        %479 = vmatpush.msra.mxu0 %v426
        %480 = vmatmul.f32.gmra.mxu0 %v456
        %v481 = vpop.f32.mrf.mxu0
        %v482 = vadd.f32 %v443, %v481
        %483 = vmatmul.f32.gmra.mxu0 %v459
        %v484 = vpop.f32.mrf.mxu0
        %v485 = vadd.f32 %v448, %v484
        %486 = vmatmul.f32.gmra.mxu0 %v462
        %v487 = vpop.f32.mrf.mxu0
        %v488 = vadd.f32 %v453, %v487
        %489 = vdwg.mxu0
        %490 = vmatpush.msra.mxu0 0.0
        %491 = vmatpush.msra.mxu0 0.0
        %492 = vmatpush.msra.mxu0 0.0
        %493 = vmatpush.msra.mxu0 0.0
        %494 = vmatpush.msra.mxu0 0.0
        %495 = vmatpush.msra.mxu0 0.0
        %496 = vmatpush.msra.mxu0 0.0
        %497 = vmatpush.msra.mxu0 0.0
        %498 = vmatpush.msra.mxu0 0.0
        %499 = vmatpush.msra.mxu0 0.0
        %500 = vmatpush.msra.mxu0 0.0
        %501 = vmatpush.msra.mxu0 0.0
        %502 = vmatpush.msra.mxu0 0.0
        %503 = vmatpush.msra.mxu0 %v431
        %504 = vmatpush.msra.mxu0 %v429
        %505 = vmatpush.msra.mxu0 %v427
        %506 = vmatmul.f32.gmra.mxu0 %v456
        %v507 = vpop.f32.mrf.mxu0
        %v508 = vadd.f32 %v443, %v507
        %509 = vmatmul.f32.gmra.mxu0 %v459
        %v510 = vpop.f32.mrf.mxu0
        %v511 = vadd.f32 %v448, %v510
        %512 = vmatmul.f32.gmra.mxu0 %v462
        %v513 = vpop.f32.mrf.mxu0
        %v514 = vadd.f32 %v453, %v513
        %515 = vdwg.mxu0
        %v516 = vtanh.pop %v482
        %v517 = vtanh.pop %v508
        %v518 = vtanh.pop %v485
        %v519 = vtanh.pop %v511
        %v520 = vtanh.pop %v488
        %v521 = vtanh.pop %v514
        %v522 = vadd.f32 %v516, %v426
        %v523 = vadd.f32 %v517, %v427
        %v524 = vadd.f32 %v518, %v428
        %v525 = vadd.f32 %v519, %v429
        %v526 = vadd.f32 %v520, %v430
        %v527 = vadd.f32 %v521, %v431
        %s528 = scalar_lea.vmem %s3, 48
        %v529 = vld [vmem:[%s528] sm:$0xff]
        %v530 = vld [vmem:[%s528 + $0x8] sm:$0xff]
        %v531 = vld [vmem:[%s528 + $0x10] sm:$0xff]
        %s532 = scalar_lea.vmem %s4, 48
        %v533 = vld [vmem:[%s532] sm:$0xff]
        %v534 = vld [vmem:[%s532 + $0x8] sm:$0xff]
        %v535 = vld [vmem:[%s532 + $0x10] sm:$0xff]
        %537 = vset.pattern.permute.xlu0 0
        %538 = vperm.xlu0 %537, %v533
        %v539 = vpop.permute.xlu0 %538
        %542 = vset.pattern.permute.xlu0 0
        %543 = vperm.xlu0 %542, %v534
        %v544 = vpop.permute.xlu0 %543
        %547 = vset.pattern.permute.xlu0 0
        %548 = vperm.xlu0 %547, %v535
        %v549 = vpop.permute.xlu0 %548
        %v552 = vsel %vm358, %v529, 0
        %v555 = vsel %vm358, %v530, 0
        %v558 = vsel %vm358, %v531, 0
        %560 = vmatpush.msra.mxu0 0.0
        %561 = vmatpush.msra.mxu0 0.0
        %562 = vmatpush.msra.mxu0 0.0
        %563 = vmatpush.msra.mxu0 0.0
        %564 = vmatpush.msra.mxu0 0.0
        %565 = vmatpush.msra.mxu0 0.0
        %566 = vmatpush.msra.mxu0 0.0
        %567 = vmatpush.msra.mxu0 0.0
        %568 = vmatpush.msra.mxu0 0.0
        %569 = vmatpush.msra.mxu0 0.0
        %570 = vmatpush.msra.mxu0 0.0
        %571 = vmatpush.msra.mxu0 0.0
        %572 = vmatpush.msra.mxu0 0.0
        %573 = vmatpush.msra.mxu0 %v526
        %574 = vmatpush.msra.mxu0 %v524
        %575 = vmatpush.msra.mxu0 %v522
        %576 = vmatmul.f32.gmra.mxu0 %v552
        %v577 = vpop.f32.mrf.mxu0
        %v578 = vadd.f32 %v539, %v577
        %579 = vmatmul.f32.gmra.mxu0 %v555
        %v580 = vpop.f32.mrf.mxu0
        %v581 = vadd.f32 %v544, %v580
        %582 = vmatmul.f32.gmra.mxu0 %v558
        %v583 = vpop.f32.mrf.mxu0
        %v584 = vadd.f32 %v549, %v583
        %585 = vdwg.mxu0
        %586 = vmatpush.msra.mxu0 0.0
        %587 = vmatpush.msra.mxu0 0.0
        %588 = vmatpush.msra.mxu0 0.0
        %589 = vmatpush.msra.mxu0 0.0
        %590 = vmatpush.msra.mxu0 0.0
        %591 = vmatpush.msra.mxu0 0.0
        %592 = vmatpush.msra.mxu0 0.0
        %593 = vmatpush.msra.mxu0 0.0
        %594 = vmatpush.msra.mxu0 0.0
        %595 = vmatpush.msra.mxu0 0.0
        %596 = vmatpush.msra.mxu0 0.0
        %597 = vmatpush.msra.mxu0 0.0
        %598 = vmatpush.msra.mxu0 0.0
        %599 = vmatpush.msra.mxu0 %v527
        %600 = vmatpush.msra.mxu0 %v525
        %601 = vmatpush.msra.mxu0 %v523
        %602 = vmatmul.f32.gmra.mxu0 %v552
        %v603 = vpop.f32.mrf.mxu0
        %v604 = vadd.f32 %v539, %v603
        %605 = vmatmul.f32.gmra.mxu0 %v555
        %v606 = vpop.f32.mrf.mxu0
        %v607 = vadd.f32 %v544, %v606
        %608 = vmatmul.f32.gmra.mxu0 %v558
        %v609 = vpop.f32.mrf.mxu0
        %v610 = vadd.f32 %v549, %v609
        %611 = vdwg.mxu0
        %v612 = vtanh.pop %v578
        %v613 = vtanh.pop %v604
        %v614 = vtanh.pop %v581
        %v615 = vtanh.pop %v607
        %v616 = vtanh.pop %v584
        %v617 = vtanh.pop %v610
        %v618 = vadd.f32 %v612, %v522
        %v619 = vadd.f32 %v613, %v523
        %v620 = vadd.f32 %v614, %v524
        %v621 = vadd.f32 %v615, %v525
        %v622 = vadd.f32 %v616, %v526
        %v623 = vadd.f32 %v617, %v527
        %v624 = vld [vmem:[%s5] sm:$0x7]
        %v625 = vld [vmem:[%s6] sm:$0x7]
        %627 = vset.pattern.permute.xlu0 0
        %628 = vperm.xlu0 %627, %v625
        %v629 = vpop.permute.xlu0 %628
        %v632 = vsel %vm358, %v624, 0
        %634 = vmatpush.msra.mxu0 0.0
        %635 = vmatpush.msra.mxu0 0.0
        %636 = vmatpush.msra.mxu0 0.0
        %637 = vmatpush.msra.mxu0 0.0
        %638 = vmatpush.msra.mxu0 0.0
        %639 = vmatpush.msra.mxu0 0.0
        %640 = vmatpush.msra.mxu0 0.0
        %641 = vmatpush.msra.mxu0 0.0
        %642 = vmatpush.msra.mxu0 0.0
        %643 = vmatpush.msra.mxu0 0.0
        %644 = vmatpush.msra.mxu0 0.0
        %645 = vmatpush.msra.mxu0 0.0
        %646 = vmatpush.msra.mxu0 0.0
        %647 = vmatpush.msra.mxu0 %v622
        %648 = vmatpush.msra.mxu0 %v620
        %649 = vmatpush.msra.mxu0 %v618
        %650 = vmatmul.f32.gmra.mxu0 %v632
        %v651 = vpop.f32.mrf.mxu0
        %v652 = vadd.f32 %v629, %v651
        %653 = vdwg.mxu0
        %654 = vmatpush.msra.mxu0 0.0
        %655 = vmatpush.msra.mxu0 0.0
        %656 = vmatpush.msra.mxu0 0.0
        %657 = vmatpush.msra.mxu0 0.0
        %658 = vmatpush.msra.mxu0 0.0
        %659 = vmatpush.msra.mxu0 0.0
        %660 = vmatpush.msra.mxu0 0.0
        %661 = vmatpush.msra.mxu0 0.0
        %662 = vmatpush.msra.mxu0 0.0
        %663 = vmatpush.msra.mxu0 0.0
        %664 = vmatpush.msra.mxu0 0.0
        %665 = vmatpush.msra.mxu0 0.0
        %666 = vmatpush.msra.mxu0 0.0
        %667 = vmatpush.msra.mxu0 %v623
        %668 = vmatpush.msra.mxu0 %v621
        %669 = vmatpush.msra.mxu0 %v619
        %670 = vmatmul.f32.gmra.mxu0 %v632
        %v671 = vpop.f32.mrf.mxu0
        %v672 = vadd.f32 %v629, %v671
        %673 = vdwg.mxu0
        %v674 = vlaneseq
        %v675 = vshrl.u32 %v674, 7
        %vm676 = vcmp.eq.s32.totalorder %v675, 0
        %v677 = vsel %vm676, 0.5, 0.1
        %v678 = vxor.u32 %v652, 2147483648
        %v679 = vxor.u32 %v672, 2147483648
        %v680 = vmul.f32 %v678, 1.442695
        %v681 = vpow.pop %v680
        %v682 = vmul.f32 %v679, 1.442695
        %v683 = vpow.pop %v682
        %v684 = vadd.f32 %v681, 1.0
        %v685 = vadd.f32 %v683, 1.0
        %v686 = vrcp.pop %v684
        %v687 = vmul.f32 %v684, %v686
        %v688 = vsub.f32 1.0, %v687
        %v689 = vmul.f32 %v686, %v688
        %v690 = vadd.f32 %v686, %v689
        %vm691 = vweird.f32 %v684
        %vm692 = vweird.f32 %v686
        %vm693 = vmor %vm691, %vm692
        %v694 = vsel %vm693, %v686, %v690
        %v695 = vand.u32 2147483647, %v684
        %vm696 = vcmp.eq.f32.partialorder %v695, 8.507059e+37
        %v697 = vand.u32 %v684, 2147483648
        %v698 = vor.u32 1.1754944e-38, %v697
        %v699 = vsel %vm696, %v698, %v694
        %v700 = vmul.f32 1.0, %v699
        %v701 = vrcp.pop %v685
        %v702 = vmul.f32 %v685, %v701
        %v703 = vsub.f32 1.0, %v702
        %v704 = vmul.f32 %v701, %v703
        %v705 = vadd.f32 %v701, %v704
        %vm706 = vweird.f32 %v685
        %vm707 = vweird.f32 %v701
        %vm708 = vmor %vm706, %vm707
        %v709 = vsel %vm708, %v701, %v705
        %v710 = vand.u32 2147483647, %v685
        %vm711 = vcmp.eq.f32.partialorder %v710, 8.507059e+37
        %v712 = vand.u32 %v685, 2147483648
        %v713 = vor.u32 1.1754944e-38, %v712
        %v714 = vsel %vm711, %v713, %v709
        %v715 = vmul.f32 1.0, %v714
        %v716 = vmul.f32 %v700, %v677
        %v717 = vmul.f32 %v715, %v677
        %v720 = vrot.slane %v717, 4
        %vm721 = vcmask 1043456
        %v722 = vsel %vm721, %v716, %v720
        %724 = vst [vmem:[%s270] sm:$0x77] %v722
        %s725 = sand.u32 %s181, 1
        %s726 = scalar_lea.sflag [#allocation3], %s725
        %s727 = sand.u32 %s181, 1
        %s728 = smul.addr %s727, 8
        %s729 = scalar_lea.vmem [#allocation2], %s728
        // Predicated region
        $region49: #{tpu_custom_call.1} parent=47 // pred_check
          %p730 = pneg %p191
        $region50: #{tpu_custom_call.1} parent=47 // pred_check_branch
          %732 = sbr.rel (%p730) target = $region52
        $region51: #{tpu_custom_call.1} parent=47 // pred_region
          %s733 = smul.u32 2, %s21
          %735 = vsyncadd %s726, 0
          %s736 = smul.addr %s733, 4
          %s737 = scalar_lea.hbm %s7, %s736
          %s739 = sshll.u32 %s729, 4
          %s740 = int_to_ptr.vmem [resolvable:$true] %s739
          %s741 = sshll.u32 %s737, 4
          %s742 = int_to_ptr.hbm [resolvable:$true] %s741
          %744 = dma.vmem_to_hbm [thread:$0]  %s740, 128, %s742, %s726
        $region52: #{tpu_custom_call.1} parent=47 // pred_fallthru
          _
      $region48: #{tpu_custom_call.1} parent=5 // pred_fallthru
        _
      %p745 = scmp.le.s32.totalorder 2, %s16
      // Predicated region
      $region53: #{tpu_custom_call.1} parent=5 // pred_check
        %p746 = pneg %p745
      $region54: #{tpu_custom_call.1} parent=5 // pred_check_branch
        %748 = sbr.rel (%p746) target = $region56
      $region55: #{tpu_custom_call.1} parent=5 // pred_region
        %s749 = ssub.s32 %s16, 2
        // Predicated region
        $region57: #{tpu_custom_call.1} parent=55 // pred_check
          %p750 = pneg %p197
        $region58: #{tpu_custom_call.1} parent=55 // pred_check_branch
          %752 = sbr.rel (%p750) target = $region60
        $region59: #{tpu_custom_call.1} parent=55 // pred_region
          %s753 = sand.u32 %s182, 1
          %s754 = scalar_lea.sflag [#allocation3], %s753
          %s755 = sand.u32 %s182, 1
          %s756 = smul.addr %s755, 8
          %s757 = scalar_lea.vmem [#allocation2], %s756
          %759 = dma.done %s754, 128
        $region60: #{tpu_custom_call.1} parent=55 // pred_fallthru
          _
      $region56: #{tpu_custom_call.1} parent=5 // pred_fallthru
        _
    $region6: #{tpu_custom_call.1} parent=1 // loop_footer
      %s20 = sadd.s32 1, %s16
    $region7: #{tpu_custom_call.1} parent=1 // loop_footer_branch
      %15 = sbr.rel target = $region3
    $region8: #{tpu_custom_call.1} parent=1 // loop_exit
      _
    %760 = vsyncpa [#allocation3], 1
    %s761 = scalar_lea.sflag [#allocation3], 1
    %762 = vsyncpa %s761, 1

</llo_original>
